<compile_context>
chip_gen: v5e
topology: v5e:2x2
jax: 0.10.0
libtpu: 0.0.40
codegen_flags: <defaults>
</compile_context>

<pallas_src>
import functools

import jax
import jax.numpy as jnp
from jax import lax
from jax.experimental import pallas as pl
from jax.experimental.pallas import tpu as pltpu

BN_EPS = 1e-5
LEAKY_SLOPE = 0.2
LANE = 128                      # pad channel dims to multiples of 128 lanes
TM_MAX = 1024                   # row-tile (B*N) size; 512-2048 range per review
VMEM_LIMIT_BYTES = 64 * 1024 * 1024


def _round_up(x, m):
    return ((x + m - 1) // m) * m


def _valid_row_mask(tm, m_valid):
    """(tm, 1) bool mask of rows inside the un-padded M = B*N range."""
    row = pl.program_id(0) * tm + lax.broadcasted_iota(jnp.int32, (tm, 1), 0)
    return row < m_valid


# -----------------------------------------------------------------------------
# Kernels
# -----------------------------------------------------------------------------
def _input_stats_kernel(x_ref, g_ref, s_ref, *, tm, m_valid):
    """Accumulate G = X^T X and colsum(X) across the M grid axis (masked rows)."""
    @pl.when(pl.program_id(0) == 0)
    def _init():
        g_ref[...] = jnp.zeros_like(g_ref)
        s_ref[...] = jnp.zeros_like(s_ref)

    mask = _valid_row_mask(tm, m_valid)
    x = jnp.where(mask, x_ref[...], 0.0)                        # bf16 (tm, Cin_p)
    g_ref[...] += jnp.dot(x.T, x, preferred_element_type=jnp.float32)
    s_ref[...] += jnp.sum(x.astype(jnp.float32), axis=0, keepdims=True)


def _apply(x_ref, w_ref, scale_ref, shift_ref):
    """Pointwise conv (bf16 MXU) + folded BatchNorm + LeakyReLU; f32 epilogue."""
    y = jnp.dot(x_ref[...], w_ref[...], preferred_element_type=jnp.float32)
    z = y * scale_ref[...] + shift_ref[...]
    return jnp.where(z > 0, z, LEAKY_SLOPE * z)


def _layer_kernel_plain(x_ref, w_ref, scale_ref, shift_ref, h_ref):
    # Last layer: pure per-tile map, result written straight to the output tile.
    h_ref[...] = _apply(x_ref, w_ref, scale_ref, shift_ref).astype(h_ref.dtype)


def _layer_kernel_stats(x_ref, w_ref, scale_ref, shift_ref,
                        h_ref, g_ref, s_ref, *, tm, m_valid):
    """Apply the layer AND accumulate the next layer's Gram / colsum in one pass."""
    @pl.when(pl.program_id(0) == 0)
    def _init():
        g_ref[...] = jnp.zeros_like(g_ref)
        s_ref[...] = jnp.zeros_like(s_ref)

    h = _apply(x_ref, w_ref, scale_ref, shift_ref)              # f32 (tm, Cout_p)
    hb = h.astype(h_ref.dtype)                                  # bf16 activation
    h_ref[...] = hb

    mask = _valid_row_mask(tm, m_valid)
    hm = jnp.where(mask, hb, 0.0)                               # bf16 masked
    g_ref[...] += jnp.dot(hm.T, hm, preferred_element_type=jnp.float32)
    s_ref[...] += jnp.sum(hm.astype(jnp.float32), axis=0, keepdims=True)


# -----------------------------------------------------------------------------
# pallas_call wrappers
# -----------------------------------------------------------------------------
def _input_stats(h, tm, m_valid):
    m_pad, c_p = h.shape
    return pl.pallas_call(
        functools.partial(_input_stats_kernel, tm=tm, m_valid=m_valid),
        grid=(m_pad // tm,),
        in_specs=[pl.BlockSpec((tm, c_p), lambda i: (i, 0))],
        out_specs=(pl.BlockSpec((c_p, c_p), lambda i: (0, 0)),
                   pl.BlockSpec((1, c_p), lambda i: (0, 0))),
        out_shape=(jax.ShapeDtypeStruct((c_p, c_p), jnp.float32),
                   jax.ShapeDtypeStruct((1, c_p), jnp.float32)),
        compiler_params=pltpu.CompilerParams(
            dimension_semantics=("arbitrary",),           # reduction over M tiles
            vmem_limit_bytes=VMEM_LIMIT_BYTES),
    )(h)


def _layer_call(h, w_bf16, scale, shift, tm, m_valid, with_stats):
    m_pad, cin_p = h.shape
    cout_p = w_bf16.shape[1]
    in_specs = [pl.BlockSpec((tm, cin_p), lambda i: (i, 0)),     # activation tiles
                pl.BlockSpec((cin_p, cout_p), lambda i: (0, 0)), # resident weight
                pl.BlockSpec((1, cout_p), lambda i: (0, 0)),     # resident scale
                pl.BlockSpec((1, cout_p), lambda i: (0, 0))]     # resident shift
    h_spec = pl.BlockSpec((tm, cout_p), lambda i: (i, 0))
    h_shape = jax.ShapeDtypeStruct((m_pad, cout_p), jnp.bfloat16)

    if with_stats:
        out = pl.pallas_call(
            functools.partial(_layer_kernel_stats, tm=tm, m_valid=m_valid),
            grid=(m_pad // tm,),
            in_specs=in_specs,
            out_specs=(h_spec,
                       pl.BlockSpec((cout_p, cout_p), lambda i: (0, 0)),
                       pl.BlockSpec((1, cout_p), lambda i: (0, 0))),
            out_shape=(h_shape,
                       jax.ShapeDtypeStruct((cout_p, cout_p), jnp.float32),
                       jax.ShapeDtypeStruct((1, cout_p), jnp.float32)),
            compiler_params=pltpu.CompilerParams(
                dimension_semantics=("arbitrary",),       # stats accumulate over M
                vmem_limit_bytes=VMEM_LIMIT_BYTES),
        )(h, w_bf16, scale, shift)
        return out[0], out[1], out[2]

    out = pl.pallas_call(
        _layer_kernel_plain,
        grid=(m_pad // tm,),
        in_specs=in_specs,
        out_specs=(h_spec,),
        out_shape=(h_shape,),
        compiler_params=pltpu.CompilerParams(
            dimension_semantics=("parallel",),            # pure map -> megacore ok
            vmem_limit_bytes=VMEM_LIMIT_BYTES),
    )(h, w_bf16, scale, shift)
    return out[0], None, None


# -----------------------------------------------------------------------------
# BatchNorm folding (train-mode batch stats, derived from Gram / colsum)
# -----------------------------------------------------------------------------
def _bn_fold(g_acc, s_acc, w_f32, gamma_p, beta_p, m_valid):
    """Fold train-mode BatchNorm1d into per-channel scale/shift:
       sum(y) = colsum(x) @ W ; sum(y^2) = diag(W^T (x^T x) W)."""
    inv_m = 1.0 / float(m_valid)
    sum_y = s_acc @ w_f32                                     # (1, Cout_p)
    mean = sum_y * inv_m
    sumsq_y = jnp.sum(w_f32 * (g_acc @ w_f32), axis=0, keepdims=True)
    var = jnp.maximum(sumsq_y * inv_m - mean * mean, 0.0)     # biased (train) var
    inv_std = lax.rsqrt(var + BN_EPS)
    scale = gamma_p * inv_std
    shift = beta_p - mean * scale
    return scale, shift


# -----------------------------------------------------------------------------
# Parameters & forward
# -----------------------------------------------------------------------------
def init_params(key, in_feat, layer_dims):
    """Deterministic init mirroring the PyTorch module's shapes.
    Conv1d weight (out, in, 1) is stored transposed+squeezed as (in, out)."""
    params = []
    in_dim = in_feat
    for out_dim in layer_dims:
        key, wk = jax.random.split(key)
        bound = 1.0 / (in_dim ** 0.5)
        w_t = jax.random.uniform(wk, (in_dim, out_dim), jnp.float32, -bound, bound)
        gamma = jnp.ones((1, out_dim), jnp.float32)   # BN weight init
        beta = jnp.zeros((1, out_dim), jnp.float32)   # BN bias init
        params.append((w_t, gamma, beta))
        in_dim = out_dim
    return params


def conv1d_forward(x, params):
    """x: (B, C_in, N) float32  ->  (B, layer_dims[-1], N) float32."""
    b, c_in, n = x.shape
    m = b * n
    tm = min(TM_MAX, _round_up(m, 8))
    m_pad = _round_up(m, tm)
    cin_p = _round_up(c_in, LANE)

    # TODO(synk): fold this transpose/pad/cast into the first-layer BlockSpec
    # (read (B, C, N) tiles and transpose per-tile) to save one HBM round trip.
    h = jnp.transpose(x, (0, 2, 1)).reshape(m, c_in)
    h = jnp.pad(h, ((0, m_pad - m), (0, cin_p - c_in))).astype(jnp.bfloat16)

    # Gram / colsum of the current activation -> next layer's global BN stats.
    g_acc, s_acc = _input_stats(h, tm, m)

    n_layers = len(params)
    c_out = c_in
    for li, (w_t, gamma, beta) in enumerate(params):
        cin_l, c_out = w_t.shape
        cin_lp = _round_up(cin_l, LANE)          # == h.shape[1]
        cout_p = _round_up(c_out, LANE)

        w_pad = jnp.zeros((cin_lp, cout_p), jnp.float32).at[:cin_l, :c_out].set(w_t)
        w_bf16 = w_pad.astype(jnp.bfloat16)
        # Padded output channels get gamma = beta = 0 -> exactly zero activations.
        gamma_p = jnp.zeros((1, cout_p), jnp.float32).at[:, :c_out].set(gamma)
        beta_p = jnp.zeros((1, cout_p), jnp.float32).at[:, :c_out].set(beta)

        scale, shift = _bn_fold(g_acc, s_acc, w_bf16.astype(jnp.float32),
                                gamma_p, beta_p, m)
        with_stats = (li + 1) < n_layers         # last layer: no stats, parallel map
        h, g_acc, s_acc = _layer_call(h, w_bf16, scale, shift, tm, m, with_stats)

    # TODO(synk): BatchNorm1d running_mean/running_var buffer updates (training-mode
    # side effect) are not emitted; only the normalized forward output is produced.
    out = h[:m, :c_out].astype(jnp.float32)
    return jnp.transpose(out.reshape(b, n, c_out), (0, 2, 1))


if __name__ == "__main__":
    key = jax.random.PRNGKey(0)
    key, xk = jax.random.split(key)

    B, C_IN, N = 2, 4, 16
    LAYER_DIMS = (32, 64)

    x = jax.random.normal(xk, (B, C_IN, N), jnp.float32)
    params = init_params(key, C_IN, LAYER_DIMS)

    fwd = jax.jit(conv1d_forward)
    out = jax.block_until_ready(fwd(x, params))

    assert out.shape == (B, LAYER_DIMS[-1], N), out.shape
    assert bool(jnp.all(jnp.isfinite(out)))
    print("KERNEL_OK")
</pallas_src>

<mosaic_0001>
module attributes {stable_mosaic.version = 11 : i64} {
  func.func @_input_stats_kernel(%arg0: i32, %arg1: memref<32x128xbf16, #tpu.memory_space<vmem>>, %arg2: memref<128x128xf32, #tpu.memory_space<vmem>>, %arg3: memref<1x128xf32, #tpu.memory_space<vmem>>) attributes {dimension_semantics = [#tpu.dimension_semantics<arbitrary>], iteration_bounds = array<i64: 1>, scalar_prefetch = 0 : i64, scratch_operands = 0 : i64, tpu.core_type = #tpu.core_type<tc>, window_params = [{transform_indices = @transform_0, window_bounds = array<i64: 32, 128>}, {pipeline_mode = #tpu.pipeline_mode<synchronous>, transform_indices = @transform_1, window_bounds = array<i64: 128, 128>}, {pipeline_mode = #tpu.pipeline_mode<synchronous>, transform_indices = @transform_2, window_bounds = array<i64: 1, 128>}]} {
    %c0_i32 = arith.constant 0 : i32
    %0 = arith.cmpi eq, %arg0, %c0_i32 : i32
    %1 = arith.extui %0 : i1 to i32
    %c0_i32_0 = arith.constant 0 : i32
    %2 = arith.cmpi ne, %1, %c0_i32_0 : i32
    scf.if %2 {
      %cst_13 = arith.constant 0.000000e+00 : f32
      %26 = vector.broadcast %cst_13 : f32 to vector<128x128xf32>
      %c0_14 = arith.constant 0 : index
      %c0_15 = arith.constant 0 : index
      %27 = vector.load %arg2[%c0_14, %c0_15] : memref<128x128xf32, #tpu.memory_space<vmem>>, vector<128x128xf32>
      tpu.vector_store %arg2[%c0_14, %c0_15], %26 {strides = array<i32>} : memref<128x128xf32, #tpu.memory_space<vmem>>, vector<128x128xf32>,
      %cst_16 = arith.constant 0.000000e+00 : f32
      %28 = vector.broadcast %cst_16 : f32 to vector<1x128xf32>
      %c0_17 = arith.constant 0 : index
      %c0_18 = arith.constant 0 : index
      %29 = vector.load %arg3[%c0_17, %c0_18] : memref<1x128xf32, #tpu.memory_space<vmem>>, vector<1x128xf32>
      tpu.vector_store %arg3[%c0_17, %c0_18], %28 {strides = array<i32>} : memref<1x128xf32, #tpu.memory_space<vmem>>, vector<1x128xf32>,
    } else {
    }
    %c32_i32 = arith.constant 32 : i32
    %3 = arith.muli %arg0, %c32_i32 : i32
    %4 = tpu.iota {dimensions = array<i32: 0>} : vector<32x1xi32>
    %5 = vector.broadcast %3 : i32 to vector<32x1xi32>
    %6 = arith.addi %5, %4 : vector<32x1xi32>
    %c32_i32_1 = arith.constant 32 : i32
    %7 = vector.broadcast %c32_i32_1 : i32 to vector<32x1xi32>
    %8 = arith.cmpi slt, %6, %7 : vector<32x1xi32>
    %c0 = arith.constant 0 : index
    %c0_2 = arith.constant 0 : index
    %9 = vector.load %arg1[%c0, %c0_2] : memref<32x128xbf16, #tpu.memory_space<vmem>>, vector<32x128xbf16>
    %cst = arith.constant 0.000000e+00 : f32
    %10 = arith.truncf %cst : f32 to bf16
    %11 = vector.shape_cast %8 : vector<32x1xi1> to vector<32x1xi1>
    %12 = vector.broadcast %11 : vector<32x1xi1> to vector<32x128xi1>
    %13 = vector.broadcast %10 : bf16 to vector<32x128xbf16>
    %14 = arith.select %12, %9, %13 : vector<32x128xi1>, vector<32x128xbf16>
    %c0_3 = arith.constant 0 : index
    %c0_4 = arith.constant 0 : index
    %15 = vector.load %arg2[%c0_3, %c0_4] : memref<128x128xf32, #tpu.memory_space<vmem>>, vector<128x128xf32>
    %16 = tpu.transpose %14, [1, 0] : vector<32x128xbf16> -> vector<128x32xbf16>
    %cst_5 = arith.constant dense<0.000000e+00> : vector<128x128xf32>
    %17 = tpu.matmul %16, %14, %cst_5 {dimension_numbers = #tpu.dot_dimension_numbers<[1], [0], [0], [1], [0, 0, 1, 1], [], []>} : vector<128x32xbf16>, vector<32x128xbf16>, vector<128x128xf32> -> vector<128x128xf32>
    %18 = arith.addf %15, %17 : vector<128x128xf32>
    %c0_6 = arith.constant 0 : index
    %c0_7 = arith.constant 0 : index
    %19 = vector.load %arg2[%c0_6, %c0_7] : memref<128x128xf32, #tpu.memory_space<vmem>>, vector<128x128xf32>
    tpu.vector_store %arg2[%c0_6, %c0_7], %18 {strides = array<i32>} : memref<128x128xf32, #tpu.memory_space<vmem>>, vector<128x128xf32>,
    %c0_8 = arith.constant 0 : index
    %c0_9 = arith.constant 0 : index
    %20 = vector.load %arg3[%c0_8, %c0_9] : memref<1x128xf32, #tpu.memory_space<vmem>>, vector<1x128xf32>
    %21 = arith.extf %14 : vector<32x128xbf16> to vector<32x128xf32>
    %cst_10 = arith.constant dense<0.000000e+00> : vector<128xf32>
    %22 = vector.multi_reduction <add>, %21, %cst_10 [0] : vector<32x128xf32> to vector<128xf32>
    %23 = vector.shape_cast %22 : vector<128xf32> to vector<1x128xf32>
    %24 = arith.addf %20, %23 : vector<1x128xf32>
    %c0_11 = arith.constant 0 : index
    %c0_12 = arith.constant 0 : index
    %25 = vector.load %arg3[%c0_11, %c0_12] : memref<1x128xf32, #tpu.memory_space<vmem>>, vector<1x128xf32>
    tpu.vector_store %arg3[%c0_11, %c0_12], %24 {strides = array<i32>} : memref<1x128xf32, #tpu.memory_space<vmem>>, vector<1x128xf32>,
    return
  }
  func.func @transform_0(%arg0: i32) -> (i32, i32) {
    %c0_i32 = arith.constant 0 : i32
    %c0_i32_0 = arith.constant 0 : i32
    return %arg0, %c0_i32 : i32, i32
  }
  func.func @transform_1(%arg0: i32) -> (i32, i32) {
    %c0_i32 = arith.constant 0 : i32
    %c0_i32_0 = arith.constant 0 : i32
    %c0_i32_1 = arith.constant 0 : i32
    return %c0_i32, %c0_i32_0 : i32, i32
  }
  func.func @transform_2(%arg0: i32) -> (i32, i32) {
    %c0_i32 = arith.constant 0 : i32
    %c0_i32_0 = arith.constant 0 : i32
    %c0_i32_1 = arith.constant 0 : i32
    return %c0_i32, %c0_i32_0 : i32, i32
  }
}

module attributes {stable_mosaic.version = 11 : i64} {
  func.func @_layer_kernel_stats(%arg0: i32, %arg1: memref<32x128xbf16, #tpu.memory_space<vmem>>, %arg2: memref<128x128xbf16, #tpu.memory_space<vmem>>, %arg3: memref<1x128xf32, #tpu.memory_space<vmem>>, %arg4: memref<1x128xf32, #tpu.memory_space<vmem>>, %arg5: memref<32x128xbf16, #tpu.memory_space<vmem>>, %arg6: memref<128x128xf32, #tpu.memory_space<vmem>>, %arg7: memref<1x128xf32, #tpu.memory_space<vmem>>) attributes {dimension_semantics = [#tpu.dimension_semantics<arbitrary>], iteration_bounds = array<i64: 1>, scalar_prefetch = 0 : i64, scratch_operands = 0 : i64, tpu.core_type = #tpu.core_type<tc>, window_params = [{transform_indices = @transform_0, window_bounds = array<i64: 32, 128>}, {pipeline_mode = #tpu.pipeline_mode<synchronous>, transform_indices = @transform_1, window_bounds = array<i64: 128, 128>}, {pipeline_mode = #tpu.pipeline_mode<synchronous>, transform_indices = @transform_2, window_bounds = array<i64: 1, 128>}, {pipeline_mode = #tpu.pipeline_mode<synchronous>, transform_indices = @transform_3, window_bounds = array<i64: 1, 128>}, {transform_indices = @transform_4, window_bounds = array<i64: 32, 128>}, {pipeline_mode = #tpu.pipeline_mode<synchronous>, transform_indices = @transform_5, window_bounds = array<i64: 128, 128>}, {pipeline_mode = #tpu.pipeline_mode<synchronous>, transform_indices = @transform_6, window_bounds = array<i64: 1, 128>}]} {
    %c0_i32 = arith.constant 0 : i32
    %0 = arith.cmpi eq, %arg0, %c0_i32 : i32
    %1 = arith.extui %0 : i1 to i32
    %c0_i32_0 = arith.constant 0 : i32
    %2 = arith.cmpi ne, %1, %c0_i32_0 : i32
    scf.if %2 {
      %cst_24 = arith.constant 0.000000e+00 : f32
      %41 = vector.broadcast %cst_24 : f32 to vector<128x128xf32>
      %c0_25 = arith.constant 0 : index
      %c0_26 = arith.constant 0 : index
      %42 = vector.load %arg6[%c0_25, %c0_26] : memref<128x128xf32, #tpu.memory_space<vmem>>, vector<128x128xf32>
      tpu.vector_store %arg6[%c0_25, %c0_26], %41 {strides = array<i32>} : memref<128x128xf32, #tpu.memory_space<vmem>>, vector<128x128xf32>,
      %cst_27 = arith.constant 0.000000e+00 : f32
      %43 = vector.broadcast %cst_27 : f32 to vector<1x128xf32>
      %c0_28 = arith.constant 0 : index
      %c0_29 = arith.constant 0 : index
      %44 = vector.load %arg7[%c0_28, %c0_29] : memref<1x128xf32, #tpu.memory_space<vmem>>, vector<1x128xf32>
      tpu.vector_store %arg7[%c0_28, %c0_29], %43 {strides = array<i32>} : memref<1x128xf32, #tpu.memory_space<vmem>>, vector<1x128xf32>,
    } else {
    }
    %c0 = arith.constant 0 : index
    %c0_1 = arith.constant 0 : index
    %3 = vector.load %arg1[%c0, %c0_1] : memref<32x128xbf16, #tpu.memory_space<vmem>>, vector<32x128xbf16>
    %c0_2 = arith.constant 0 : index
    %c0_3 = arith.constant 0 : index
    %4 = vector.load %arg2[%c0_2, %c0_3] : memref<128x128xbf16, #tpu.memory_space<vmem>>, vector<128x128xbf16>
    %cst = arith.constant dense<0.000000e+00> : vector<32x128xf32>
    %5 = tpu.matmul %3, %4, %cst {dimension_numbers = #tpu.dot_dimension_numbers<[1], [0], [0], [1], [0, 0, 1, 1], [], []>} : vector<32x128xbf16>, vector<128x128xbf16>, vector<32x128xf32> -> vector<32x128xf32>
    %c0_4 = arith.constant 0 : index
    %c0_5 = arith.constant 0 : index
    %6 = vector.load %arg3[%c0_4, %c0_5] : memref<1x128xf32, #tpu.memory_space<vmem>>, vector<1x128xf32>
    %7 = vector.broadcast %6 : vector<1x128xf32> to vector<32x128xf32>
    %8 = arith.mulf %5, %7 : vector<32x128xf32>
    %c0_6 = arith.constant 0 : index
    %c0_7 = arith.constant 0 : index
    %9 = vector.load %arg4[%c0_6, %c0_7] : memref<1x128xf32, #tpu.memory_space<vmem>>, vector<1x128xf32>
    %10 = vector.broadcast %9 : vector<1x128xf32> to vector<32x128xf32>
    %11 = arith.addf %8, %10 : vector<32x128xf32>
    %cst_8 = arith.constant 0.000000e+00 : f32
    %12 = vector.broadcast %cst_8 : f32 to vector<32x128xf32>
    %13 = arith.cmpf ogt, %11, %12 : vector<32x128xf32>
    %cst_9 = arith.constant 2.000000e-01 : f32
    %14 = vector.broadcast %cst_9 : f32 to vector<32x128xf32>
    %15 = arith.mulf %14, %11 : vector<32x128xf32>
    %16 = arith.select %13, %11, %15 : vector<32x128xi1>, vector<32x128xf32>
    %17 = arith.truncf %16 : vector<32x128xf32> to vector<32x128xbf16>
    %c0_10 = arith.constant 0 : index
    %c0_11 = arith.constant 0 : index
    %18 = vector.load %arg5[%c0_10, %c0_11] : memref<32x128xbf16, #tpu.memory_space<vmem>>, vector<32x128xbf16>
    tpu.vector_store %arg5[%c0_10, %c0_11], %17 {strides = array<i32>} : memref<32x128xbf16, #tpu.memory_space<vmem>>, vector<32x128xbf16>,
    %c32_i32 = arith.constant 32 : i32
    %19 = arith.muli %arg0, %c32_i32 : i32
    %20 = tpu.iota {dimensions = array<i32: 0>} : vector<32x1xi32>
    %21 = vector.broadcast %19 : i32 to vector<32x1xi32>
    %22 = arith.addi %21, %20 : vector<32x1xi32>
    %c32_i32_12 = arith.constant 32 : i32
    %23 = vector.broadcast %c32_i32_12 : i32 to vector<32x1xi32>
    %24 = arith.cmpi slt, %22, %23 : vector<32x1xi32>
    %cst_13 = arith.constant 0.000000e+00 : f32
    %25 = arith.truncf %cst_13 : f32 to bf16
    %26 = vector.shape_cast %24 : vector<32x1xi1> to vector<32x1xi1>
    %27 = vector.broadcast %26 : vector<32x1xi1> to vector<32x128xi1>
    %28 = vector.broadcast %25 : bf16 to vector<32x128xbf16>
    %29 = arith.select %27, %17, %28 : vector<32x128xi1>, vector<32x128xbf16>
    %c0_14 = arith.constant 0 : index
    %c0_15 = arith.constant 0 : index
    %30 = vector.load %arg6[%c0_14, %c0_15] : memref<128x128xf32, #tpu.memory_space<vmem>>, vector<128x128xf32>
    %31 = tpu.transpose %29, [1, 0] : vector<32x128xbf16> -> vector<128x32xbf16>
    %cst_16 = arith.constant dense<0.000000e+00> : vector<128x128xf32>
    %32 = tpu.matmul %31, %29, %cst_16 {dimension_numbers = #tpu.dot_dimension_numbers<[1], [0], [0], [1], [0, 0, 1, 1], [], []>} : vector<128x32xbf16>, vector<32x128xbf16>, vector<128x128xf32> -> vector<128x128xf32>
    %33 = arith.addf %30, %32 : vector<128x128xf32>
    %c0_17 = arith.constant 0 : index
    %c0_18 = arith.constant 0 : index
    %34 = vector.load %arg6[%c0_17, %c0_18] : memref<128x128xf32, #tpu.memory_space<vmem>>, vector<128x128xf32>
    tpu.vector_store %arg6[%c0_17, %c0_18], %33 {strides = array<i32>} : memref<128x128xf32, #tpu.memory_space<vmem>>, vector<128x128xf32>,
    %c0_19 = arith.constant 0 : index
    %c0_20 = arith.constant 0 : index
    %35 = vector.load %arg7[%c0_19, %c0_20] : memref<1x128xf32, #tpu.memory_space<vmem>>, vector<1x128xf32>
    %36 = arith.extf %29 : vector<32x128xbf16> to vector<32x128xf32>
    %cst_21 = arith.constant dense<0.000000e+00> : vector<128xf32>
    %37 = vector.multi_reduction <add>, %36, %cst_21 [0] : vector<32x128xf32> to vector<128xf32>
    %38 = vector.shape_cast %37 : vector<128xf32> to vector<1x128xf32>
    %39 = arith.addf %35, %38 : vector<1x128xf32>
    %c0_22 = arith.constant 0 : index
    %c0_23 = arith.constant 0 : index
    %40 = vector.load %arg7[%c0_22, %c0_23] : memref<1x128xf32, #tpu.memory_space<vmem>>, vector<1x128xf32>
    tpu.vector_store %arg7[%c0_22, %c0_23], %39 {strides = array<i32>} : memref<1x128xf32, #tpu.memory_space<vmem>>, vector<1x128xf32>,
    return
  }
  func.func @transform_0(%arg0: i32) -> (i32, i32) {
    %c0_i32 = arith.constant 0 : i32
    %c0_i32_0 = arith.constant 0 : i32
    return %arg0, %c0_i32 : i32, i32
  }
  func.func @transform_1(%arg0: i32) -> (i32, i32) {
    %c0_i32 = arith.constant 0 : i32
    %c0_i32_0 = arith.constant 0 : i32
    %c0_i32_1 = arith.constant 0 : i32
    return %c0_i32, %c0_i32_0 : i32, i32
  }
  func.func @transform_2(%arg0: i32) -> (i32, i32) {
    %c0_i32 = arith.constant 0 : i32
    %c0_i32_0 = arith.constant 0 : i32
    %c0_i32_1 = arith.constant 0 : i32
    return %c0_i32, %c0_i32_0 : i32, i32
  }
  func.func @transform_3(%arg0: i32) -> (i32, i32) {
    %c0_i32 = arith.constant 0 : i32
    %c0_i32_0 = arith.constant 0 : i32
    %c0_i32_1 = arith.constant 0 : i32
    return %c0_i32, %c0_i32_0 : i32, i32
  }
  func.func @transform_4(%arg0: i32) -> (i32, i32) {
    %c0_i32 = arith.constant 0 : i32
    %c0_i32_0 = arith.constant 0 : i32
    return %arg0, %c0_i32 : i32, i32
  }
  func.func @transform_5(%arg0: i32) -> (i32, i32) {
    %c0_i32 = arith.constant 0 : i32
    %c0_i32_0 = arith.constant 0 : i32
    %c0_i32_1 = arith.constant 0 : i32
    return %c0_i32, %c0_i32_0 : i32, i32
  }
  func.func @transform_6(%arg0: i32) -> (i32, i32) {
    %c0_i32 = arith.constant 0 : i32
    %c0_i32_0 = arith.constant 0 : i32
    %c0_i32_1 = arith.constant 0 : i32
    return %c0_i32, %c0_i32_0 : i32, i32
  }
}

module attributes {stable_mosaic.version = 11 : i64} {
  func.func @_layer_kernel_plain(%arg0: i32, %arg1: memref<32x128xbf16, #tpu.memory_space<vmem>>, %arg2: memref<128x128xbf16, #tpu.memory_space<vmem>>, %arg3: memref<1x128xf32, #tpu.memory_space<vmem>>, %arg4: memref<1x128xf32, #tpu.memory_space<vmem>>, %arg5: memref<32x128xbf16, #tpu.memory_space<vmem>>) attributes {dimension_semantics = [#tpu.dimension_semantics<parallel>], iteration_bounds = array<i64: 1>, scalar_prefetch = 0 : i64, scratch_operands = 0 : i64, tpu.core_type = #tpu.core_type<tc>, window_params = [{transform_indices = @transform_0, window_bounds = array<i64: 32, 128>}, {pipeline_mode = #tpu.pipeline_mode<synchronous>, transform_indices = @transform_1, window_bounds = array<i64: 128, 128>}, {pipeline_mode = #tpu.pipeline_mode<synchronous>, transform_indices = @transform_2, window_bounds = array<i64: 1, 128>}, {pipeline_mode = #tpu.pipeline_mode<synchronous>, transform_indices = @transform_3, window_bounds = array<i64: 1, 128>}, {transform_indices = @transform_4, window_bounds = array<i64: 32, 128>}]} {
    %c0 = arith.constant 0 : index
    %c0_0 = arith.constant 0 : index
    %0 = vector.load %arg1[%c0, %c0_0] : memref<32x128xbf16, #tpu.memory_space<vmem>>, vector<32x128xbf16>
    %c0_1 = arith.constant 0 : index
    %c0_2 = arith.constant 0 : index
    %1 = vector.load %arg2[%c0_1, %c0_2] : memref<128x128xbf16, #tpu.memory_space<vmem>>, vector<128x128xbf16>
    %cst = arith.constant dense<0.000000e+00> : vector<32x128xf32>
    %2 = tpu.matmul %0, %1, %cst {dimension_numbers = #tpu.dot_dimension_numbers<[1], [0], [0], [1], [0, 0, 1, 1], [], []>} : vector<32x128xbf16>, vector<128x128xbf16>, vector<32x128xf32> -> vector<32x128xf32>
    %c0_3 = arith.constant 0 : index
    %c0_4 = arith.constant 0 : index
    %3 = vector.load %arg3[%c0_3, %c0_4] : memref<1x128xf32, #tpu.memory_space<vmem>>, vector<1x128xf32>
    %4 = vector.broadcast %3 : vector<1x128xf32> to vector<32x128xf32>
    %5 = arith.mulf %2, %4 : vector<32x128xf32>
    %c0_5 = arith.constant 0 : index
    %c0_6 = arith.constant 0 : index
    %6 = vector.load %arg4[%c0_5, %c0_6] : memref<1x128xf32, #tpu.memory_space<vmem>>, vector<1x128xf32>
    %7 = vector.broadcast %6 : vector<1x128xf32> to vector<32x128xf32>
    %8 = arith.addf %5, %7 : vector<32x128xf32>
    %cst_7 = arith.constant 0.000000e+00 : f32
    %9 = vector.broadcast %cst_7 : f32 to vector<32x128xf32>
    %10 = arith.cmpf ogt, %8, %9 : vector<32x128xf32>
    %cst_8 = arith.constant 2.000000e-01 : f32
    %11 = vector.broadcast %cst_8 : f32 to vector<32x128xf32>
    %12 = arith.mulf %11, %8 : vector<32x128xf32>
    %13 = arith.select %10, %8, %12 : vector<32x128xi1>, vector<32x128xf32>
    %14 = arith.truncf %13 : vector<32x128xf32> to vector<32x128xbf16>
    %c0_9 = arith.constant 0 : index
    %c0_10 = arith.constant 0 : index
    %15 = vector.load %arg5[%c0_9, %c0_10] : memref<32x128xbf16, #tpu.memory_space<vmem>>, vector<32x128xbf16>
    tpu.vector_store %arg5[%c0_9, %c0_10], %14 {strides = array<i32>} : memref<32x128xbf16, #tpu.memory_space<vmem>>, vector<32x128xbf16>,
    return
  }
  func.func @transform_0(%arg0: i32) -> (i32, i32) {
    %c0_i32 = arith.constant 0 : i32
    %c0_i32_0 = arith.constant 0 : i32
    return %arg0, %c0_i32 : i32, i32
  }
  func.func @transform_1(%arg0: i32) -> (i32, i32) {
    %c0_i32 = arith.constant 0 : i32
    %c0_i32_0 = arith.constant 0 : i32
    %c0_i32_1 = arith.constant 0 : i32
    return %c0_i32, %c0_i32_0 : i32, i32
  }
  func.func @transform_2(%arg0: i32) -> (i32, i32) {
    %c0_i32 = arith.constant 0 : i32
    %c0_i32_0 = arith.constant 0 : i32
    %c0_i32_1 = arith.constant 0 : i32
    return %c0_i32, %c0_i32_0 : i32, i32
  }
  func.func @transform_3(%arg0: i32) -> (i32, i32) {
    %c0_i32 = arith.constant 0 : i32
    %c0_i32_0 = arith.constant 0 : i32
    %c0_i32_1 = arith.constant 0 : i32
    return %c0_i32, %c0_i32_0 : i32, i32
  }
  func.func @transform_4(%arg0: i32) -> (i32, i32) {
    %c0_i32 = arith.constant 0 : i32
    %c0_i32_0 = arith.constant 0 : i32
    return %arg0, %c0_i32 : i32, i32
  }
}

</mosaic_0001>

<llo_original>
// kernel: conv1d_forward.4
$region0: #{conv1d_forward.4}
  #allocation0 [shape = 'u32[]', space=smem, size = 0x4, offset = 0x4, fixed_abs, tag = 'smem constant byte address 0x4 - core index']
  #allocation1 [shape = 'u32[72,128]{1,0:T(1,128)}', space=vmem, size = 0x9000, scoped, tag = 'internal scratch']
  %s0 = inlined_call_operand.vmem [shape: bf16[32,128], index: 0, kind: input, shape index: {}]
  %s1 = inlined_call_operand.vmem [shape: bf16[128,128], index: 1, kind: input, shape index: {}]
  %s2 = inlined_call_operand.vmem [shape: f32[1,128], index: 2, kind: input, shape index: {}]
  %s3 = inlined_call_operand.vmem [shape: f32[1,128], index: 3, kind: input, shape index: {}]
  %s4 = inlined_call_operand.vmem [shape: bf16[32,128], index: 4, kind: output, shape index: {0}]
  %s5 = inlined_call_operand.vmem [shape: f32[128,128], index: 5, kind: output, shape index: {1}]
  %s6 = inlined_call_operand.vmem [shape: f32[1,128], index: 6, kind: output, shape index: {2}]
  %7 = xla_tuple %s4, %s5, %s6
  %s8 = sld [smem:[#allocation0]]
  $region46: #{conv1d_forward.4} parent=0
    _
  %s10 = ssub.s32 1, %s8
  %s11 = scalar_select 0, %s10, %s8
  // Predicated region
  $region2: #{conv1d_forward.4} parent=0 // pred_check
    _
  $region3: #{conv1d_forward.4} parent=0 // pred_check_branch
    %13 = sbr.rel (0) target = $region5
  $region4: #{conv1d_forward.4} parent=0 // pred_region
    _
  $region5: #{conv1d_forward.4} parent=0 // pred_fallthru
    _
  // Predicated region
  $region6: #{conv1d_forward.4} parent=0 // pred_check
    _
  $region7: #{conv1d_forward.4} parent=0 // pred_check_branch
    %15 = sbr.rel (0) target = $region9
  $region8: #{conv1d_forward.4} parent=0 // pred_region
    _
  $region9: #{conv1d_forward.4} parent=0 // pred_fallthru
    _
  // Predicated region
  $region10: #{conv1d_forward.4} parent=0 // pred_check
    _
  $region11: #{conv1d_forward.4} parent=0 // pred_check_branch
    %17 = sbr.rel (0) target = $region13
  $region12: #{conv1d_forward.4} parent=0 // pred_region
    _
  $region13: #{conv1d_forward.4} parent=0 // pred_fallthru
    _
  // Predicated region
  $region14: #{conv1d_forward.4} parent=0 // pred_check
    _
  $region15: #{conv1d_forward.4} parent=0 // pred_check_branch
    %19 = sbr.rel (0) target = $region17
  $region16: #{conv1d_forward.4} parent=0 // pred_region
    _
  $region17: #{conv1d_forward.4} parent=0 // pred_fallthru
    _
  %p21 = scmp.eq.s32.totalorder 0, 0
  // Predicated region
  $region18: #{conv1d_forward.4} parent=0 // pred_check
    %p22 = pneg %p21
  $region19: #{conv1d_forward.4} parent=0 // pred_check_branch
    %24 = sbr.rel (%p22) target = $region21
  $region20: #{conv1d_forward.4} parent=0 // pred_region
    %25 = vst [vmem:[%s5] sm:$0xff] 0.0
    %26 = vst [vmem:[%s5 + $0x8] sm:$0xff] 0.0
    %27 = vst [vmem:[%s5 + $0x10] sm:$0xff] 0.0
    %28 = vst [vmem:[%s5 + $0x18] sm:$0xff] 0.0
    %29 = vst [vmem:[%s5 + $0x20] sm:$0xff] 0.0
    %30 = vst [vmem:[%s5 + $0x28] sm:$0xff] 0.0
    %31 = vst [vmem:[%s5 + $0x30] sm:$0xff] 0.0
    %32 = vst [vmem:[%s5 + $0x38] sm:$0xff] 0.0
    %33 = vst [vmem:[%s5 + $0x40] sm:$0xff] 0.0
    %34 = vst [vmem:[%s5 + $0x48] sm:$0xff] 0.0
    %35 = vst [vmem:[%s5 + $0x50] sm:$0xff] 0.0
    %36 = vst [vmem:[%s5 + $0x58] sm:$0xff] 0.0
    %37 = vst [vmem:[%s5 + $0x60] sm:$0xff] 0.0
    %38 = vst [vmem:[%s5 + $0x68] sm:$0xff] 0.0
    %39 = vst [vmem:[%s5 + $0x70] sm:$0xff] 0.0
    %40 = vst [vmem:[%s5 + $0x78] sm:$0xff] 0.0
    %41 = vst [vmem:[%s6] sm:$0x1] 0.0
  $region21: #{conv1d_forward.4} parent=0 // pred_fallthru
    _
  %v42 = vld [vmem:[%s0] sm:$0xf]
  %v43 = vld [vmem:[%s0 + $0x4] sm:$0xf]
  %v44 = vld [vmem:[%s0 + $0x8] sm:$0xf]
  %v45 = vld [vmem:[%s0 + $0xc] sm:$0xf]
  %v46 = vld [vmem:[%s1] sm:$0xf]
  %v47 = vld [vmem:[%s1 + $0x4] sm:$0xf]
  %v48 = vld [vmem:[%s1 + $0x8] sm:$0xf]
  %v49 = vld [vmem:[%s1 + $0xc] sm:$0xf]
  %v50 = vld [vmem:[%s1 + $0x10] sm:$0xf]
  %v51 = vld [vmem:[%s1 + $0x14] sm:$0xf]
  %v52 = vld [vmem:[%s1 + $0x18] sm:$0xf]
  %v53 = vld [vmem:[%s1 + $0x1c] sm:$0xf]
  %v54 = vld [vmem:[%s1 + $0x20] sm:$0xf]
  %v55 = vld [vmem:[%s1 + $0x24] sm:$0xf]
  %v56 = vld [vmem:[%s1 + $0x28] sm:$0xf]
  %v57 = vld [vmem:[%s1 + $0x2c] sm:$0xf]
  %v58 = vld [vmem:[%s1 + $0x30] sm:$0xf]
  %v59 = vld [vmem:[%s1 + $0x34] sm:$0xf]
  %v60 = vld [vmem:[%s1 + $0x38] sm:$0xf]
  %v61 = vld [vmem:[%s1 + $0x3c] sm:$0xf]
  %v66 = vunpack.c.l.b16 %v42
  %v67 = vunpack.c.l.b16 %v43
  %v68 = vunpack.c.l.b16 %v44
  %v69 = vunpack.c.l.b16 %v45
  %v70 = vpack.c.b16 %v67, %v66
  %v71 = vpack.c.b16 %v69, %v68
  %v90 = vunpack.c.l.b16 %v46
  %v91 = vunpack.c.l.b16 %v47
  %v92 = vunpack.c.l.b16 %v48
  %v93 = vunpack.c.l.b16 %v49
  %v94 = vunpack.c.l.b16 %v50
  %v95 = vunpack.c.l.b16 %v51
  %v96 = vunpack.c.l.b16 %v52
  %v97 = vunpack.c.l.b16 %v53
  %v98 = vunpack.c.l.b16 %v54
  %v99 = vunpack.c.l.b16 %v55
  %v100 = vunpack.c.l.b16 %v56
  %v101 = vunpack.c.l.b16 %v57
  %v102 = vunpack.c.l.b16 %v58
  %v103 = vunpack.c.l.b16 %v59
  %v104 = vunpack.c.l.b16 %v60
  %v105 = vunpack.c.l.b16 %v61
  %v106 = vpack.c.b16 %v91, %v90
  %v107 = vpack.c.b16 %v93, %v92
  %v108 = vpack.c.b16 %v95, %v94
  %v109 = vpack.c.b16 %v97, %v96
  %v110 = vpack.c.b16 %v99, %v98
  %v111 = vpack.c.b16 %v101, %v100
  %v112 = vpack.c.b16 %v103, %v102
  %v113 = vpack.c.b16 %v105, %v104
  %122 = vmatpush.bf16.msra.mxu0 %v113
  %123 = vmatpush.bf16.msra.mxu0 %v112
  %124 = vmatpush.bf16.msra.mxu0 %v111
  %125 = vmatpush.bf16.msra.mxu0 %v110
  %126 = vmatpush.bf16.msra.mxu0 %v109
  %127 = vmatpush.bf16.msra.mxu0 %v108
  %128 = vmatpush.bf16.msra.mxu0 %v107
  %129 = vmatpush.bf16.msra.mxu0 %v106
  %130 = vmatmul.bf16.gmra.mxu0 %v70
  %v131 = vpop.f32.mrf.mxu0
  %v132 = vadd.f32 0.0, %v131
  %v133 = vpop.f32.mrf.mxu0
  %v134 = vadd.f32 0.0, %v133
  %135 = vmatmul.bf16.gmra.mxu0 %v71
  %v136 = vpop.f32.mrf.mxu0
  %v137 = vadd.f32 0.0, %v136
  %v138 = vpop.f32.mrf.mxu0
  %v139 = vadd.f32 0.0, %v138
  %140 = vdwg.mxu0
  %v141 = vld [vmem:[%s2] sm:$0x1]
  %v143 = vperm.slane %v141, 0
  %v145 = vmul.f32 %v132, %v143
  %v146 = vmul.f32 %v134, %v143
  %v147 = vmul.f32 %v137, %v143
  %v148 = vmul.f32 %v139, %v143
  %v149 = vld [vmem:[%s3] sm:$0x1]
  %v151 = vperm.slane %v149, 0
  %v153 = vadd.f32 %v145, %v151
  %v154 = vadd.f32 %v146, %v151
  %v155 = vadd.f32 %v147, %v151
  %v156 = vadd.f32 %v148, %v151
  %vm157 = vcmp.gt.f32.partialorder %v153, 0.0
  %vm158 = vcmp.gt.f32.partialorder %v154, 0.0
  %vm159 = vcmp.gt.f32.partialorder %v155, 0.0
  %vm160 = vcmp.gt.f32.partialorder %v156, 0.0
  %v161 = vmul.f32 %v153, 0.2
  %v162 = vmul.f32 %v154, 0.2
  %v163 = vmul.f32 %v155, 0.2
  %v164 = vmul.f32 %v156, 0.2
  %v165 = vsel %vm157, %v153, %v161
  %v166 = vsel %vm158, %v154, %v162
  %v167 = vsel %vm159, %v155, %v163
  %v168 = vsel %vm160, %v156, %v164
  %v169 = vpack.c.bf16 %v165, %v165
  %v170 = vpack.c.bf16 %v166, %v166
  %v171 = vpack.c.bf16 %v167, %v167
  %v172 = vpack.c.bf16 %v168, %v168
  %173 = vst [vmem:[%s4] sm:$0xf] %v169
  %174 = vst [vmem:[%s4 + $0x4] sm:$0xf] %v170
  %175 = vst [vmem:[%s4 + $0x8] sm:$0xf] %v171
  %176 = vst [vmem:[%s4 + $0xc] sm:$0xf] %v172
  %s177 = smul.u32 0, 32
  %v178 = vlaneseq
  %v179 = vshrl.u32 %v178, 7
  %v180 = vadd.s32 %v179, 8
  %v181 = vadd.s32 %v179, 16
  %v182 = vadd.s32 %v179, 24
  %v183 = vstv %s177
  %v184 = vadd.s32 %v183, %v179
  %v185 = vadd.s32 %v183, %v180
  %v186 = vadd.s32 %v183, %v181
  %v187 = vadd.s32 %v183, %v182
  %vm188 = vcmp.lt.s32.totalorder %v184, 32
  %vm189 = vcmp.lt.s32.totalorder %v185, 32
  %vm190 = vcmp.lt.s32.totalorder %v186, 32
  %vm191 = vcmp.lt.s32.totalorder %v187, 32
  %v192 = vsel %vm188, 1, 0
  %v193 = vsel %vm189, 1, 0
  %v194 = vsel %vm190, 1, 0
  %v195 = vsel %vm191, 1, 0
  %vm196 = vcmp.eq.s32.totalorder %v192, 1
  %vm197 = vcmp.eq.s32.totalorder %v193, 1
  %vm198 = vcmp.eq.s32.totalorder %v194, 1
  %vm199 = vcmp.eq.s32.totalorder %v195, 1
  %vm200 = vmpackc.low %vm196, %vm196
  %vm201 = vmpackc.low %vm197, %vm197
  %vm202 = vmpackc.low %vm198, %vm198
  %vm203 = vmpackc.low %vm199, %vm199
  %v204 = vsel %vm200, %v169, 0
  %v205 = vsel %vm201, %v170, 0
  %v206 = vsel %vm202, %v171, 0
  %v207 = vsel %vm203, %v172, 0
  %v208 = vld [vmem:[%s5] sm:$0xff]
  %v209 = vld [vmem:[%s5 + $0x8] sm:$0xff]
  %v210 = vld [vmem:[%s5 + $0x10] sm:$0xff]
  %v211 = vld [vmem:[%s5 + $0x18] sm:$0xff]
  %v212 = vld [vmem:[%s5 + $0x20] sm:$0xff]
  %v213 = vld [vmem:[%s5 + $0x28] sm:$0xff]
  %v214 = vld [vmem:[%s5 + $0x30] sm:$0xff]
  %v215 = vld [vmem:[%s5 + $0x38] sm:$0xff]
  %v216 = vld [vmem:[%s5 + $0x40] sm:$0xff]
  %v217 = vld [vmem:[%s5 + $0x48] sm:$0xff]
  %v218 = vld [vmem:[%s5 + $0x50] sm:$0xff]
  %v219 = vld [vmem:[%s5 + $0x58] sm:$0xff]
  %v220 = vld [vmem:[%s5 + $0x60] sm:$0xff]
  %v221 = vld [vmem:[%s5 + $0x68] sm:$0xff]
  %v222 = vld [vmem:[%s5 + $0x70] sm:$0xff]
  %v223 = vld [vmem:[%s5 + $0x78] sm:$0xff]
  %v228 = vunpack.c.l.b16 %v204
  %v229 = vunpack.c.l.b16 %v205
  %v230 = vunpack.c.l.b16 %v206
  %v231 = vunpack.c.l.b16 %v207
  %v232 = vpack.c.b16 %v229, %v228
  %v233 = vpack.c.b16 %v231, %v230
  %236 = vxpose.xlu0.c.b16.start [1/8] %v232, 128
  %237 = vxpose.xlu0.c.b16.cont [2/8] %v233, 128
  %238 = vxpose.xlu0.c.b16.cont [3/8] 0, 128
  %239 = vxpose.xlu0.c.b16.cont [4/8] 0, 128
  %240 = vxpose.xlu0.c.b16.cont [5/8] 0, 128
  %241 = vxpose.xlu0.c.b16.cont [6/8] 0, 128
  %242 = vxpose.xlu0.c.b16.cont [7/8] 0, 128
  %243 = vxpose.xlu0.c.b16.end [8/8] 0, 128
  %v244 = vpop.trf.xlu0
  %v245 = vpop.trf.xlu0
  %v246 = vpop.trf.xlu0
  %v247 = vpop.trf.xlu0
  %v248 = vpop.trf.xlu0
  %v249 = vpop.trf.xlu0
  %v250 = vpop.trf.xlu0
  %v251 = vpop.trf.xlu0
  %vm252 = vcmask 261120
  %v254 = vsel %vm252, %v244, 0
  %v257 = vsel %vm252, %v245, 0
  %v260 = vsel %vm252, %v246, 0
  %v263 = vsel %vm252, %v247, 0
  %v266 = vsel %vm252, %v248, 0
  %v269 = vsel %vm252, %v249, 0
  %v272 = vsel %vm252, %v250, 0
  %v275 = vsel %vm252, %v251, 0
  %277 = vmatpush.bf16.msra.mxu0 0
  %278 = vmatpush.bf16.msra.mxu0 0
  %279 = vmatpush.bf16.msra.mxu0 0
  %280 = vmatpush.bf16.msra.mxu0 0
  %281 = vmatpush.bf16.msra.mxu0 0
  %282 = vmatpush.bf16.msra.mxu0 0
  %283 = vmatpush.bf16.msra.mxu0 %v233
  %284 = vmatpush.bf16.msra.mxu0 %v232
  %285 = vmatmul.bf16.gmra.mxu0 %v254
  %v286 = vpop.f32.mrf.mxu0
  %v287 = vadd.f32 0.0, %v286
  %v288 = vpop.f32.mrf.mxu0
  %v289 = vadd.f32 0.0, %v288
  %290 = vmatmul.bf16.gmra.mxu0 %v257
  %v291 = vpop.f32.mrf.mxu0
  %v292 = vadd.f32 0.0, %v291
  %v293 = vpop.f32.mrf.mxu0
  %v294 = vadd.f32 0.0, %v293
  %295 = vmatmul.bf16.gmra.mxu0 %v260
  %v296 = vpop.f32.mrf.mxu0
  %v297 = vadd.f32 0.0, %v296
  %v298 = vpop.f32.mrf.mxu0
  %v299 = vadd.f32 0.0, %v298
  %300 = vmatmul.bf16.gmra.mxu0 %v263
  %v301 = vpop.f32.mrf.mxu0
  %v302 = vadd.f32 0.0, %v301
  %v303 = vpop.f32.mrf.mxu0
  %v304 = vadd.f32 0.0, %v303
  %305 = vmatmul.bf16.gmra.mxu0 %v266
  %v306 = vpop.f32.mrf.mxu0
  %v307 = vadd.f32 0.0, %v306
  %v308 = vpop.f32.mrf.mxu0
  %v309 = vadd.f32 0.0, %v308
  %310 = vmatmul.bf16.gmra.mxu0 %v269
  %v311 = vpop.f32.mrf.mxu0
  %v312 = vadd.f32 0.0, %v311
  %v313 = vpop.f32.mrf.mxu0
  %v314 = vadd.f32 0.0, %v313
  %315 = vmatmul.bf16.gmra.mxu0 %v272
  %v316 = vpop.f32.mrf.mxu0
  %v317 = vadd.f32 0.0, %v316
  %v318 = vpop.f32.mrf.mxu0
  %v319 = vadd.f32 0.0, %v318
  %320 = vmatmul.bf16.gmra.mxu0 %v275
  %v321 = vpop.f32.mrf.mxu0
  %v322 = vadd.f32 0.0, %v321
  %v323 = vpop.f32.mrf.mxu0
  %v324 = vadd.f32 0.0, %v323
  %325 = vdwg.mxu0
  %v326 = vadd.f32 %v208, %v287
  %v327 = vadd.f32 %v209, %v289
  %v328 = vadd.f32 %v210, %v292
  %v329 = vadd.f32 %v211, %v294
  %v330 = vadd.f32 %v212, %v297
  %v331 = vadd.f32 %v213, %v299
  %v332 = vadd.f32 %v214, %v302
  %v333 = vadd.f32 %v215, %v304
  %v334 = vadd.f32 %v216, %v307
  %v335 = vadd.f32 %v217, %v309
  %v336 = vadd.f32 %v218, %v312
  %v337 = vadd.f32 %v219, %v314
  %v338 = vadd.f32 %v220, %v317
  %v339 = vadd.f32 %v221, %v319
  %v340 = vadd.f32 %v222, %v322
  %v341 = vadd.f32 %v223, %v324
  %342 = vst [vmem:[%s5] sm:$0xff] %v326
  %343 = vst [vmem:[%s5 + $0x8] sm:$0xff] %v327
  %344 = vst [vmem:[%s5 + $0x10] sm:$0xff] %v328
  %345 = vst [vmem:[%s5 + $0x18] sm:$0xff] %v329
  %346 = vst [vmem:[%s5 + $0x20] sm:$0xff] %v330
  %347 = vst [vmem:[%s5 + $0x28] sm:$0xff] %v331
  %348 = vst [vmem:[%s5 + $0x30] sm:$0xff] %v332
  %349 = vst [vmem:[%s5 + $0x38] sm:$0xff] %v333
  %350 = vst [vmem:[%s5 + $0x40] sm:$0xff] %v334
  %351 = vst [vmem:[%s5 + $0x48] sm:$0xff] %v335
  %352 = vst [vmem:[%s5 + $0x50] sm:$0xff] %v336
  %353 = vst [vmem:[%s5 + $0x58] sm:$0xff] %v337
  %354 = vst [vmem:[%s5 + $0x60] sm:$0xff] %v338
  %355 = vst [vmem:[%s5 + $0x68] sm:$0xff] %v339
  %356 = vst [vmem:[%s5 + $0x70] sm:$0xff] %v340
  %357 = vst [vmem:[%s5 + $0x78] sm:$0xff] %v341
  %v358 = vld [vmem:[%s6] sm:$0x1]
  %v359 = vunpack.c.l.bf16 %v204
  %v360 = vunpack.c.l.bf16 %v205
  %v361 = vunpack.c.l.bf16 %v206
  %v362 = vunpack.c.l.bf16 %v207
  %v363 = vadd.f32 %v359, %v360
  %v364 = vadd.f32 %v363, %v361
  %v365 = vadd.f32 %v364, %v362
  %v366 = vrot.slane %v365, 4
  %v367 = vadd.f32 %v365, %v366
  %v368 = vrot.slane %v367, 2
  %v369 = vadd.f32 %v367, %v368
  %v370 = vrot.slane %v369, 1
  %v371 = vadd.f32 %v369, %v370
  %v372 = vadd.f32 %v358, %v371
  %373 = vst [vmem:[%s6] sm:$0x1] %v372
  // Predicated region
  $region22: #{conv1d_forward.4} parent=0 // pred_check
    _
  $region23: #{conv1d_forward.4} parent=0 // pred_check_branch
    %375 = sbr.rel (0) target = $region25
  $region24: #{conv1d_forward.4} parent=0 // pred_region
    _
  $region25: #{conv1d_forward.4} parent=0 // pred_fallthru
    _
  // Predicated region
  $region26: #{conv1d_forward.4} parent=0 // pred_check
    _
  $region27: #{conv1d_forward.4} parent=0 // pred_check_branch
    %377 = sbr.rel (0) target = $region29
  $region28: #{conv1d_forward.4} parent=0 // pred_region
    _
  $region29: #{conv1d_forward.4} parent=0 // pred_fallthru
    _
  // Predicated region
  $region30: #{conv1d_forward.4} parent=0 // pred_check
    _
  $region31: #{conv1d_forward.4} parent=0 // pred_check_branch
    %379 = sbr.rel (0) target = $region33
  $region32: #{conv1d_forward.4} parent=0 // pred_region
    _
  $region33: #{conv1d_forward.4} parent=0 // pred_fallthru
    _
  // Predicated region
  $region34: #{conv1d_forward.4} parent=0 // pred_check
    _
  $region35: #{conv1d_forward.4} parent=0 // pred_check_branch
    %381 = sbr.rel (0) target = $region37
  $region36: #{conv1d_forward.4} parent=0 // pred_region
    _
  $region37: #{conv1d_forward.4} parent=0 // pred_fallthru
    _
  // Predicated region
  $region38: #{conv1d_forward.4} parent=0 // pred_check
    _
  $region39: #{conv1d_forward.4} parent=0 // pred_check_branch
    %383 = sbr.rel (0) target = $region41
  $region40: #{conv1d_forward.4} parent=0 // pred_region
    _
  $region41: #{conv1d_forward.4} parent=0 // pred_fallthru
    _
  // Predicated region
  $region42: #{conv1d_forward.4} parent=0 // pred_check
    _
  $region43: #{conv1d_forward.4} parent=0 // pred_check_branch
    %385 = sbr.rel (0) target = $region45
  $region44: #{conv1d_forward.4} parent=0 // pred_region
    _
  $region45: #{conv1d_forward.4} parent=0 // pred_fallthru
    _

// kernel: conv1d_forward.3
$region0: #{conv1d_forward.3}
  #allocation0 [shape = 'u32[]', space=smem, size = 0x4, offset = 0x4, fixed_abs, tag = 'smem constant byte address 0x4 - core index']
  #allocation1 [shape = 'u32[72,128]{1,0:T(1,128)}', space=vmem, size = 0x9000, scoped, tag = 'internal scratch']
  %s0 = inlined_call_operand.vmem [shape: bf16[32,128], index: 0, kind: input, shape index: {}]
  %s1 = inlined_call_operand.vmem [shape: f32[128,128], index: 1, kind: output, shape index: {0}]
  %s2 = inlined_call_operand.vmem [shape: f32[1,128], index: 2, kind: output, shape index: {1}]
  %3 = xla_tuple %s1, %s2
  %s4 = sld [smem:[#allocation0]]
  $region26: #{conv1d_forward.3} parent=0
    _
  %s6 = ssub.s32 1, %s4
  %s7 = scalar_select 0, %s6, %s4
  // Predicated region
  $region2: #{conv1d_forward.3} parent=0 // pred_check
    _
  $region3: #{conv1d_forward.3} parent=0 // pred_check_branch
    %9 = sbr.rel (0) target = $region5
  $region4: #{conv1d_forward.3} parent=0 // pred_region
    _
  $region5: #{conv1d_forward.3} parent=0 // pred_fallthru
    _
  %p11 = scmp.eq.s32.totalorder 0, 0
  // Predicated region
  $region6: #{conv1d_forward.3} parent=0 // pred_check
    %p12 = pneg %p11
  $region7: #{conv1d_forward.3} parent=0 // pred_check_branch
    %14 = sbr.rel (%p12) target = $region9
  $region8: #{conv1d_forward.3} parent=0 // pred_region
    %15 = vst [vmem:[%s1] sm:$0xff] 0.0
    %16 = vst [vmem:[%s1 + $0x8] sm:$0xff] 0.0
    %17 = vst [vmem:[%s1 + $0x10] sm:$0xff] 0.0
    %18 = vst [vmem:[%s1 + $0x18] sm:$0xff] 0.0
    %19 = vst [vmem:[%s1 + $0x20] sm:$0xff] 0.0
    %20 = vst [vmem:[%s1 + $0x28] sm:$0xff] 0.0
    %21 = vst [vmem:[%s1 + $0x30] sm:$0xff] 0.0
    %22 = vst [vmem:[%s1 + $0x38] sm:$0xff] 0.0
    %23 = vst [vmem:[%s1 + $0x40] sm:$0xff] 0.0
    %24 = vst [vmem:[%s1 + $0x48] sm:$0xff] 0.0
    %25 = vst [vmem:[%s1 + $0x50] sm:$0xff] 0.0
    %26 = vst [vmem:[%s1 + $0x58] sm:$0xff] 0.0
    %27 = vst [vmem:[%s1 + $0x60] sm:$0xff] 0.0
    %28 = vst [vmem:[%s1 + $0x68] sm:$0xff] 0.0
    %29 = vst [vmem:[%s1 + $0x70] sm:$0xff] 0.0
    %30 = vst [vmem:[%s1 + $0x78] sm:$0xff] 0.0
    %31 = vst [vmem:[%s2] sm:$0x1] 0.0
  $region9: #{conv1d_forward.3} parent=0 // pred_fallthru
    _
  %s32 = smul.u32 0, 32
  %v33 = vlaneseq
  %v34 = vshrl.u32 %v33, 7
  %v35 = vadd.s32 %v34, 8
  %v36 = vadd.s32 %v34, 16
  %v37 = vadd.s32 %v34, 24
  %v38 = vstv %s32
  %v39 = vadd.s32 %v38, %v34
  %v40 = vadd.s32 %v38, %v35
  %v41 = vadd.s32 %v38, %v36
  %v42 = vadd.s32 %v38, %v37
  %vm43 = vcmp.lt.s32.totalorder %v39, 32
  %vm44 = vcmp.lt.s32.totalorder %v40, 32
  %vm45 = vcmp.lt.s32.totalorder %v41, 32
  %vm46 = vcmp.lt.s32.totalorder %v42, 32
  %v47 = vld [vmem:[%s0] sm:$0xf]
  %v48 = vld [vmem:[%s0 + $0x4] sm:$0xf]
  %v49 = vld [vmem:[%s0 + $0x8] sm:$0xf]
  %v50 = vld [vmem:[%s0 + $0xc] sm:$0xf]
  %v51 = vsel %vm43, 1, 0
  %v52 = vsel %vm44, 1, 0
  %v53 = vsel %vm45, 1, 0
  %v54 = vsel %vm46, 1, 0
  %vm55 = vcmp.eq.s32.totalorder %v51, 1
  %vm56 = vcmp.eq.s32.totalorder %v52, 1
  %vm57 = vcmp.eq.s32.totalorder %v53, 1
  %vm58 = vcmp.eq.s32.totalorder %v54, 1
  %vm59 = vmpackc.low %vm55, %vm55
  %vm60 = vmpackc.low %vm56, %vm56
  %vm61 = vmpackc.low %vm57, %vm57
  %vm62 = vmpackc.low %vm58, %vm58
  %v63 = vsel %vm59, %v47, 0
  %v64 = vsel %vm60, %v48, 0
  %v65 = vsel %vm61, %v49, 0
  %v66 = vsel %vm62, %v50, 0
  %v67 = vld [vmem:[%s1] sm:$0xff]
  %v68 = vld [vmem:[%s1 + $0x8] sm:$0xff]
  %v69 = vld [vmem:[%s1 + $0x10] sm:$0xff]
  %v70 = vld [vmem:[%s1 + $0x18] sm:$0xff]
  %v71 = vld [vmem:[%s1 + $0x20] sm:$0xff]
  %v72 = vld [vmem:[%s1 + $0x28] sm:$0xff]
  %v73 = vld [vmem:[%s1 + $0x30] sm:$0xff]
  %v74 = vld [vmem:[%s1 + $0x38] sm:$0xff]
  %v75 = vld [vmem:[%s1 + $0x40] sm:$0xff]
  %v76 = vld [vmem:[%s1 + $0x48] sm:$0xff]
  %v77 = vld [vmem:[%s1 + $0x50] sm:$0xff]
  %v78 = vld [vmem:[%s1 + $0x58] sm:$0xff]
  %v79 = vld [vmem:[%s1 + $0x60] sm:$0xff]
  %v80 = vld [vmem:[%s1 + $0x68] sm:$0xff]
  %v81 = vld [vmem:[%s1 + $0x70] sm:$0xff]
  %v82 = vld [vmem:[%s1 + $0x78] sm:$0xff]
  %v87 = vunpack.c.l.b16 %v63
  %v88 = vunpack.c.l.b16 %v64
  %v89 = vunpack.c.l.b16 %v65
  %v90 = vunpack.c.l.b16 %v66
  %v91 = vpack.c.b16 %v88, %v87
  %v92 = vpack.c.b16 %v90, %v89
  %95 = vxpose.xlu0.c.b16.start [1/8] %v91, 128
  %96 = vxpose.xlu0.c.b16.cont [2/8] %v92, 128
  %97 = vxpose.xlu0.c.b16.cont [3/8] 0, 128
  %98 = vxpose.xlu0.c.b16.cont [4/8] 0, 128
  %99 = vxpose.xlu0.c.b16.cont [5/8] 0, 128
  %100 = vxpose.xlu0.c.b16.cont [6/8] 0, 128
  %101 = vxpose.xlu0.c.b16.cont [7/8] 0, 128
  %102 = vxpose.xlu0.c.b16.end [8/8] 0, 128
  %v103 = vpop.trf.xlu0
  %v104 = vpop.trf.xlu0
  %v105 = vpop.trf.xlu0
  %v106 = vpop.trf.xlu0
  %v107 = vpop.trf.xlu0
  %v108 = vpop.trf.xlu0
  %v109 = vpop.trf.xlu0
  %v110 = vpop.trf.xlu0
  %vm111 = vcmask 261120
  %v113 = vsel %vm111, %v103, 0
  %v116 = vsel %vm111, %v104, 0
  %v119 = vsel %vm111, %v105, 0
  %v122 = vsel %vm111, %v106, 0
  %v125 = vsel %vm111, %v107, 0
  %v128 = vsel %vm111, %v108, 0
  %v131 = vsel %vm111, %v109, 0
  %v134 = vsel %vm111, %v110, 0
  %136 = vmatpush.bf16.msra.mxu0 0
  %137 = vmatpush.bf16.msra.mxu0 0
  %138 = vmatpush.bf16.msra.mxu0 0
  %139 = vmatpush.bf16.msra.mxu0 0
  %140 = vmatpush.bf16.msra.mxu0 0
  %141 = vmatpush.bf16.msra.mxu0 0
  %142 = vmatpush.bf16.msra.mxu0 %v92
  %143 = vmatpush.bf16.msra.mxu0 %v91
  %144 = vmatmul.bf16.gmra.mxu0 %v113
  %v145 = vpop.f32.mrf.mxu0
  %v146 = vadd.f32 0.0, %v145
  %v147 = vpop.f32.mrf.mxu0
  %v148 = vadd.f32 0.0, %v147
  %149 = vmatmul.bf16.gmra.mxu0 %v116
  %v150 = vpop.f32.mrf.mxu0
  %v151 = vadd.f32 0.0, %v150
  %v152 = vpop.f32.mrf.mxu0
  %v153 = vadd.f32 0.0, %v152
  %154 = vmatmul.bf16.gmra.mxu0 %v119
  %v155 = vpop.f32.mrf.mxu0
  %v156 = vadd.f32 0.0, %v155
  %v157 = vpop.f32.mrf.mxu0
  %v158 = vadd.f32 0.0, %v157
  %159 = vmatmul.bf16.gmra.mxu0 %v122
  %v160 = vpop.f32.mrf.mxu0
  %v161 = vadd.f32 0.0, %v160
  %v162 = vpop.f32.mrf.mxu0
  %v163 = vadd.f32 0.0, %v162
  %164 = vmatmul.bf16.gmra.mxu0 %v125
  %v165 = vpop.f32.mrf.mxu0
  %v166 = vadd.f32 0.0, %v165
  %v167 = vpop.f32.mrf.mxu0
  %v168 = vadd.f32 0.0, %v167
  %169 = vmatmul.bf16.gmra.mxu0 %v128
  %v170 = vpop.f32.mrf.mxu0
  %v171 = vadd.f32 0.0, %v170
  %v172 = vpop.f32.mrf.mxu0
  %v173 = vadd.f32 0.0, %v172
  %174 = vmatmul.bf16.gmra.mxu0 %v131
  %v175 = vpop.f32.mrf.mxu0
  %v176 = vadd.f32 0.0, %v175
  %v177 = vpop.f32.mrf.mxu0
  %v178 = vadd.f32 0.0, %v177
  %179 = vmatmul.bf16.gmra.mxu0 %v134
  %v180 = vpop.f32.mrf.mxu0
  %v181 = vadd.f32 0.0, %v180
  %v182 = vpop.f32.mrf.mxu0
  %v183 = vadd.f32 0.0, %v182
  %184 = vdwg.mxu0
  %v185 = vadd.f32 %v67, %v146
  %v186 = vadd.f32 %v68, %v148
  %v187 = vadd.f32 %v69, %v151
  %v188 = vadd.f32 %v70, %v153
  %v189 = vadd.f32 %v71, %v156
  %v190 = vadd.f32 %v72, %v158
  %v191 = vadd.f32 %v73, %v161
  %v192 = vadd.f32 %v74, %v163
  %v193 = vadd.f32 %v75, %v166
  %v194 = vadd.f32 %v76, %v168
  %v195 = vadd.f32 %v77, %v171
  %v196 = vadd.f32 %v78, %v173
  %v197 = vadd.f32 %v79, %v176
  %v198 = vadd.f32 %v80, %v178
  %v199 = vadd.f32 %v81, %v181
  %v200 = vadd.f32 %v82, %v183
  %201 = vst [vmem:[%s1] sm:$0xff] %v185
  %202 = vst [vmem:[%s1 + $0x8] sm:$0xff] %v186
  %203 = vst [vmem:[%s1 + $0x10] sm:$0xff] %v187
  %204 = vst [vmem:[%s1 + $0x18] sm:$0xff] %v188
  %205 = vst [vmem:[%s1 + $0x20] sm:$0xff] %v189
  %206 = vst [vmem:[%s1 + $0x28] sm:$0xff] %v190
  %207 = vst [vmem:[%s1 + $0x30] sm:$0xff] %v191
  %208 = vst [vmem:[%s1 + $0x38] sm:$0xff] %v192
  %209 = vst [vmem:[%s1 + $0x40] sm:$0xff] %v193
  %210 = vst [vmem:[%s1 + $0x48] sm:$0xff] %v194
  %211 = vst [vmem:[%s1 + $0x50] sm:$0xff] %v195
  %212 = vst [vmem:[%s1 + $0x58] sm:$0xff] %v196
  %213 = vst [vmem:[%s1 + $0x60] sm:$0xff] %v197
  %214 = vst [vmem:[%s1 + $0x68] sm:$0xff] %v198
  %215 = vst [vmem:[%s1 + $0x70] sm:$0xff] %v199
  %216 = vst [vmem:[%s1 + $0x78] sm:$0xff] %v200
  %v217 = vld [vmem:[%s2] sm:$0x1]
  %v218 = vunpack.c.l.bf16 %v63
  %v219 = vunpack.c.l.bf16 %v64
  %v220 = vunpack.c.l.bf16 %v65
  %v221 = vunpack.c.l.bf16 %v66
  %v222 = vadd.f32 %v218, %v219
  %v223 = vadd.f32 %v222, %v220
  %v224 = vadd.f32 %v223, %v221
  %v225 = vrot.slane %v224, 4
  %v226 = vadd.f32 %v224, %v225
  %v227 = vrot.slane %v226, 2
  %v228 = vadd.f32 %v226, %v227
  %v229 = vrot.slane %v228, 1
  %v230 = vadd.f32 %v228, %v229
  %v231 = vadd.f32 %v217, %v230
  %232 = vst [vmem:[%s2] sm:$0x1] %v231
  // Predicated region
  $region10: #{conv1d_forward.3} parent=0 // pred_check
    _
  $region11: #{conv1d_forward.3} parent=0 // pred_check_branch
    %234 = sbr.rel (0) target = $region13
  $region12: #{conv1d_forward.3} parent=0 // pred_region
    _
  $region13: #{conv1d_forward.3} parent=0 // pred_fallthru
    _
  // Predicated region
  $region14: #{conv1d_forward.3} parent=0 // pred_check
    _
  $region15: #{conv1d_forward.3} parent=0 // pred_check_branch
    %236 = sbr.rel (0) target = $region17
  $region16: #{conv1d_forward.3} parent=0 // pred_region
    _
  $region17: #{conv1d_forward.3} parent=0 // pred_fallthru
    _
  // Predicated region
  $region18: #{conv1d_forward.3} parent=0 // pred_check
    _
  $region19: #{conv1d_forward.3} parent=0 // pred_check_branch
    %238 = sbr.rel (0) target = $region21
  $region20: #{conv1d_forward.3} parent=0 // pred_region
    _
  $region21: #{conv1d_forward.3} parent=0 // pred_fallthru
    _
  // Predicated region
  $region22: #{conv1d_forward.3} parent=0 // pred_check
    _
  $region23: #{conv1d_forward.3} parent=0 // pred_check_branch
    %240 = sbr.rel (0) target = $region25
  $region24: #{conv1d_forward.3} parent=0 // pred_region
    _
  $region25: #{conv1d_forward.3} parent=0 // pred_fallthru
    _

// kernel: conv1d_forward.5
$region0: #{conv1d_forward.5}
  #allocation0 [shape = 'u32[]', space=smem, size = 0x4, offset = 0x4, fixed_abs, tag = 'smem constant byte address 0x4 - core index']
  #allocation1 [shape = 'u32[72,128]{1,0:T(1,128)}', space=vmem, size = 0x9000, scoped, tag = 'internal scratch']
  %s0 = inlined_call_operand.vmem [shape: bf16[32,128], index: 0, kind: input, shape index: {}]
  %s1 = inlined_call_operand.vmem [shape: bf16[128,128], index: 1, kind: input, shape index: {}]
  %s2 = inlined_call_operand.vmem [shape: f32[1,128], index: 2, kind: input, shape index: {}]
  %s3 = inlined_call_operand.vmem [shape: f32[1,128], index: 3, kind: input, shape index: {}]
  %s4 = inlined_call_operand.vmem [shape: bf16[32,128], index: 4, kind: output, shape index: {}]
  %s5 = sld [smem:[#allocation0]]
  $region26: #{conv1d_forward.5} parent=0
    _
  %s7 = ssub.s32 1, %s5
  %s8 = scalar_select 0, %s7, %s5
  // Predicated region
  $region2: #{conv1d_forward.5} parent=0 // pred_check
    _
  $region3: #{conv1d_forward.5} parent=0 // pred_check_branch
    %10 = sbr.rel (0) target = $region5
  $region4: #{conv1d_forward.5} parent=0 // pred_region
    _
  $region5: #{conv1d_forward.5} parent=0 // pred_fallthru
    _
  // Predicated region
  $region6: #{conv1d_forward.5} parent=0 // pred_check
    _
  $region7: #{conv1d_forward.5} parent=0 // pred_check_branch
    %12 = sbr.rel (0) target = $region9
  $region8: #{conv1d_forward.5} parent=0 // pred_region
    _
  $region9: #{conv1d_forward.5} parent=0 // pred_fallthru
    _
  // Predicated region
  $region10: #{conv1d_forward.5} parent=0 // pred_check
    _
  $region11: #{conv1d_forward.5} parent=0 // pred_check_branch
    %14 = sbr.rel (0) target = $region13
  $region12: #{conv1d_forward.5} parent=0 // pred_region
    _
  $region13: #{conv1d_forward.5} parent=0 // pred_fallthru
    _
  // Predicated region
  $region14: #{conv1d_forward.5} parent=0 // pred_check
    _
  $region15: #{conv1d_forward.5} parent=0 // pred_check_branch
    %16 = sbr.rel (0) target = $region17
  $region16: #{conv1d_forward.5} parent=0 // pred_region
    _
  $region17: #{conv1d_forward.5} parent=0 // pred_fallthru
    _
  %v17 = vld [vmem:[%s0] sm:$0xf]
  %v18 = vld [vmem:[%s0 + $0x4] sm:$0xf]
  %v19 = vld [vmem:[%s0 + $0x8] sm:$0xf]
  %v20 = vld [vmem:[%s0 + $0xc] sm:$0xf]
  %v21 = vld [vmem:[%s1] sm:$0xf]
  %v22 = vld [vmem:[%s1 + $0x4] sm:$0xf]
  %v23 = vld [vmem:[%s1 + $0x8] sm:$0xf]
  %v24 = vld [vmem:[%s1 + $0xc] sm:$0xf]
  %v25 = vld [vmem:[%s1 + $0x10] sm:$0xf]
  %v26 = vld [vmem:[%s1 + $0x14] sm:$0xf]
  %v27 = vld [vmem:[%s1 + $0x18] sm:$0xf]
  %v28 = vld [vmem:[%s1 + $0x1c] sm:$0xf]
  %v29 = vld [vmem:[%s1 + $0x20] sm:$0xf]
  %v30 = vld [vmem:[%s1 + $0x24] sm:$0xf]
  %v31 = vld [vmem:[%s1 + $0x28] sm:$0xf]
  %v32 = vld [vmem:[%s1 + $0x2c] sm:$0xf]
  %v33 = vld [vmem:[%s1 + $0x30] sm:$0xf]
  %v34 = vld [vmem:[%s1 + $0x34] sm:$0xf]
  %v35 = vld [vmem:[%s1 + $0x38] sm:$0xf]
  %v36 = vld [vmem:[%s1 + $0x3c] sm:$0xf]
  %v41 = vunpack.c.l.b16 %v17
  %v42 = vunpack.c.l.b16 %v18
  %v43 = vunpack.c.l.b16 %v19
  %v44 = vunpack.c.l.b16 %v20
  %v45 = vpack.c.b16 %v42, %v41
  %v46 = vpack.c.b16 %v44, %v43
  %v65 = vunpack.c.l.b16 %v21
  %v66 = vunpack.c.l.b16 %v22
  %v67 = vunpack.c.l.b16 %v23
  %v68 = vunpack.c.l.b16 %v24
  %v69 = vunpack.c.l.b16 %v25
  %v70 = vunpack.c.l.b16 %v26
  %v71 = vunpack.c.l.b16 %v27
  %v72 = vunpack.c.l.b16 %v28
  %v73 = vunpack.c.l.b16 %v29
  %v74 = vunpack.c.l.b16 %v30
  %v75 = vunpack.c.l.b16 %v31
  %v76 = vunpack.c.l.b16 %v32
  %v77 = vunpack.c.l.b16 %v33
  %v78 = vunpack.c.l.b16 %v34
  %v79 = vunpack.c.l.b16 %v35
  %v80 = vunpack.c.l.b16 %v36
  %v81 = vpack.c.b16 %v66, %v65
  %v82 = vpack.c.b16 %v68, %v67
  %v83 = vpack.c.b16 %v70, %v69
  %v84 = vpack.c.b16 %v72, %v71
  %v85 = vpack.c.b16 %v74, %v73
  %v86 = vpack.c.b16 %v76, %v75
  %v87 = vpack.c.b16 %v78, %v77
  %v88 = vpack.c.b16 %v80, %v79
  %97 = vmatpush.bf16.msra.mxu0 %v88
  %98 = vmatpush.bf16.msra.mxu0 %v87
  %99 = vmatpush.bf16.msra.mxu0 %v86
  %100 = vmatpush.bf16.msra.mxu0 %v85
  %101 = vmatpush.bf16.msra.mxu0 %v84
  %102 = vmatpush.bf16.msra.mxu0 %v83
  %103 = vmatpush.bf16.msra.mxu0 %v82
  %104 = vmatpush.bf16.msra.mxu0 %v81
  %105 = vmatmul.bf16.gmra.mxu0 %v45
  %v106 = vpop.f32.mrf.mxu0
  %v107 = vadd.f32 0.0, %v106
  %v108 = vpop.f32.mrf.mxu0
  %v109 = vadd.f32 0.0, %v108
  %110 = vmatmul.bf16.gmra.mxu0 %v46
  %v111 = vpop.f32.mrf.mxu0
  %v112 = vadd.f32 0.0, %v111
  %v113 = vpop.f32.mrf.mxu0
  %v114 = vadd.f32 0.0, %v113
  %115 = vdwg.mxu0
  %v116 = vld [vmem:[%s2] sm:$0x1]
  %v118 = vperm.slane %v116, 0
  %v120 = vmul.f32 %v107, %v118
  %v121 = vmul.f32 %v109, %v118
  %v122 = vmul.f32 %v112, %v118
  %v123 = vmul.f32 %v114, %v118
  %v124 = vld [vmem:[%s3] sm:$0x1]
  %v126 = vperm.slane %v124, 0
  %v128 = vadd.f32 %v120, %v126
  %v129 = vadd.f32 %v121, %v126
  %v130 = vadd.f32 %v122, %v126
  %v131 = vadd.f32 %v123, %v126
  %vm132 = vcmp.gt.f32.partialorder %v128, 0.0
  %vm133 = vcmp.gt.f32.partialorder %v129, 0.0
  %vm134 = vcmp.gt.f32.partialorder %v130, 0.0
  %vm135 = vcmp.gt.f32.partialorder %v131, 0.0
  %v136 = vmul.f32 %v128, 0.2
  %v137 = vmul.f32 %v129, 0.2
  %v138 = vmul.f32 %v130, 0.2
  %v139 = vmul.f32 %v131, 0.2
  %v140 = vsel %vm132, %v128, %v136
  %v141 = vsel %vm133, %v129, %v137
  %v142 = vsel %vm134, %v130, %v138
  %v143 = vsel %vm135, %v131, %v139
  %v144 = vpack.c.bf16 %v140, %v140
  %v145 = vpack.c.bf16 %v141, %v141
  %v146 = vpack.c.bf16 %v142, %v142
  %v147 = vpack.c.bf16 %v143, %v143
  %148 = vst [vmem:[%s4] sm:$0xf] %v144
  %149 = vst [vmem:[%s4 + $0x4] sm:$0xf] %v145
  %150 = vst [vmem:[%s4 + $0x8] sm:$0xf] %v146
  %151 = vst [vmem:[%s4 + $0xc] sm:$0xf] %v147
  // Predicated region
  $region18: #{conv1d_forward.5} parent=0 // pred_check
    _
  $region19: #{conv1d_forward.5} parent=0 // pred_check_branch
    %153 = sbr.rel (0) target = $region21
  $region20: #{conv1d_forward.5} parent=0 // pred_region
    _
  $region21: #{conv1d_forward.5} parent=0 // pred_fallthru
    _
  // Predicated region
  $region22: #{conv1d_forward.5} parent=0 // pred_check
    _
  $region23: #{conv1d_forward.5} parent=0 // pred_check_branch
    %155 = sbr.rel (0) target = $region25
  $region24: #{conv1d_forward.5} parent=0 // pred_region
    _
  $region25: #{conv1d_forward.5} parent=0 // pred_fallthru
    _

</llo_original>
